<compile_context>
chip_gen: v7x
topology: tpu7x:2x2x1
jax: 0.10.0
libtpu: 0.0.40
codegen_flags: <defaults>
</compile_context>

<pallas_src>
import jax
import jax.numpy as jnp
import numpy as np
from jax.experimental import pallas as pl
from jax.experimental.pallas import tpu as pltpu


def _se_kernel(x_ref, w1_ref, b1_ref, w2_ref, b2_ref, o_ref, scale_ref):
    # x_ref : (TB, C, HW)  TB samples, spatial flattened onto the lane axis
    # w1_ref: (C, Csq)     squeeze 1x1 conv (pre-transposed)   b1_ref: (1, Csq)
    # w2_ref: (Csq, C)     excite  1x1 conv (pre-transposed)   b2_ref: (1, C)
    # o_ref : (TB, C, HW)
    # scale_ref: (TB, C) f32 VMEM scratch for the per-channel scales
    TB, _, HW = x_ref.shape
    inv_hw = 1.0 / HW

    # Phase 1: global average pool over the lane-dense spatial axis.
    # Streaming load + reduce: only the small (TB, C) accumulator stays live.
    pooled = jnp.sum(x_ref[...].astype(jnp.float32), axis=2) * inv_hw    # (TB, C)

    # Phase 2: batched squeeze/excite MLP in f32 (1x1 convs on a 1x1 map == dense).
    y = jnp.dot(pooled, w1_ref[...],
                preferred_element_type=jnp.float32) + b1_ref[...]        # (TB, Csq)
    y = jnp.maximum(y, 0.0)
    s = jnp.dot(y, w2_ref[...],
                preferred_element_type=jnp.float32) + b2_ref[...]        # (TB, C)
    scale_ref[...] = jax.nn.sigmoid(s)                                   # EUP

    # Phase 3: per-sample rescale.  Re-read x from VMEM per sample (pl.loop)
    # so no tile-sized value is held live across phases -> no vreg spills.
    @pl.loop(0, TB)
    def _scale(b):
        sb = scale_ref[b][:, None]                                       # (C, 1)
        o_ref[b] = (x_ref[b].astype(jnp.float32) * sb).astype(o_ref.dtype)


def _choose_tile_batch(n, per_sample_bytes, target_tile_bytes):
    """Samples per grid step: ~target-sized tiles, exact divisor of n."""
    if n * per_sample_bytes <= target_tile_bytes:
        return n                               # toy sizes: whole batch, 1 step
    tb = int(max(1, min(n, target_tile_bytes // per_sample_bytes)))
    tb = min(tb, max(1, n // 2))               # keep >=2 steps for the 2-TC split
    while n % tb:                              # largest divisor of n <= tb
        tb -= 1
    return tb


def se_forward(x_nchw, params, *, target_tile_bytes=2 << 20):
    w1, b1, w2, b2 = params
    N, C, H, W = x_nchw.shape
    Csq = w1.shape[0]
    HW = H * W

    # metadata-only reshape: NCHW -> (N, C, H*W); spatial on the lane axis
    x2 = x_nchw.reshape(N, C, HW)

    # weight / bias re-layouts for the batched MLP (tiny; once per call)
    w1_k = w1[:, :, 0, 0].T                # (C, Csq)
    b1_k = b1.reshape(1, Csq)
    w2_k = w2[:, :, 0, 0].T                # (Csq, C)
    b2_k = b2.reshape(1, C)

    itemsize = jnp.dtype(x_nchw.dtype).itemsize
    per_sample = C * HW * itemsize
    TB = _choose_tile_batch(N, per_sample, target_tile_bytes)
    tile_bytes = TB * per_sample
    # in + out, double-buffered, plus weights/scratch/slack; bump past v5e's
    # 16 MiB scoped default but stay under v7x's 64 MiB physical VMEM.
    vmem_limit = int(min(48 << 20, max(32 << 20, 4 * tile_bytes + (4 << 20))))

    out = pl.pallas_call(
        _se_kernel,
        out_shape=jax.ShapeDtypeStruct((N, C, HW), x_nchw.dtype),
        grid_spec=pltpu.PrefetchScalarGridSpec(
            num_scalar_prefetch=0,
            grid=(N // TB,),
            in_specs=[
                pl.BlockSpec((TB, C, HW), lambda n: (n, 0, 0)),   # TB-sample tile
                pl.BlockSpec((C, Csq), lambda n: (0, 0)),         # weights: resident
                pl.BlockSpec((1, Csq), lambda n: (0, 0)),
                pl.BlockSpec((Csq, C), lambda n: (0, 0)),
                pl.BlockSpec((1, C), lambda n: (0, 0)),
            ],
            out_specs=pl.BlockSpec((TB, C, HW), lambda n: (n, 0, 0)),
            scratch_shapes=[pltpu.VMEM((TB, C), jnp.float32)],
        ),
        compiler_params=pltpu.CompilerParams(
            dimension_semantics=("parallel",),     # megacore split over batch (v7x)
            vmem_limit_bytes=vmem_limit),
    )(x2, w1_k, b1_k, w2_k, b2_k)

    return out.reshape(N, C, H, W)


def init_params(key, in_channels, squeeze_channels):
    """Mimics PyTorch Conv2d default init (uniform +-1/sqrt(fan_in))."""
    ks = jax.random.split(key, 4)

    def conv_init(kw, kb, shape):
        fan_in = shape[1] * shape[2] * shape[3]
        bound = 1.0 / np.sqrt(fan_in)
        w = jax.random.uniform(kw, shape, jnp.float32, -bound, bound)
        b = jax.random.uniform(kb, (shape[0],), jnp.float32, -bound, bound)
        return w, b

    w1, b1 = conv_init(ks[0], ks[1], (squeeze_channels, in_channels, 1, 1))
    w2, b2 = conv_init(ks[2], ks[3], (in_channels, squeeze_channels, 1, 1))
    return (w1, b1, w2, b2)


def se_reference(x, params):
    """Pure-JAX reference mirroring the PyTorch module."""
    w1, b1, w2, b2 = params
    y = jnp.mean(x, axis=(2, 3), keepdims=True)                        # (N,C,1,1)
    y = jax.lax.conv_general_dilated(
        y, w1, (1, 1), 'VALID',
        dimension_numbers=('NCHW', 'OIHW', 'NCHW')) + b1[None, :, None, None]
    y = jnp.maximum(y, 0.0)
    y = jax.lax.conv_general_dilated(
        y, w2, (1, 1), 'VALID',
        dimension_numbers=('NCHW', 'OIHW', 'NCHW')) + b2[None, :, None, None]
    y = jax.nn.sigmoid(y)
    return x * y


if __name__ == "__main__":
    key = jax.random.PRNGKey(0)
    kx, kp = jax.random.split(key)
    N, C, Csq, H, W = 4, 32, 8, 16, 16
    x = jax.random.normal(kx, (N, C, H, W), jnp.float32)
    params = init_params(kp, C, Csq)
    ref = se_reference(x, params)

    # Default tiling: toy batch collapses to a single grid step.
    out = jax.block_until_ready(se_forward(x, params))
    np.testing.assert_allclose(np.asarray(out), np.asarray(ref),
                               rtol=1e-4, atol=1e-5)

    # Also exercise the multi-step (TB < N) path by forcing small tiles.
    out2 = jax.block_until_ready(se_forward(x, params, target_tile_bytes=64 << 10))
    np.testing.assert_allclose(np.asarray(out2), np.asarray(ref),
                               rtol=1e-4, atol=1e-5)

    print("KERNEL_OK")
</pallas_src>

<mosaic_0001>
module attributes {stable_mosaic.version = 11 : i64} {
  func.func @_se_kernel(%arg0: i32, %arg1: memref<4x32x256xf32, #tpu.memory_space<vmem>>, %arg2: memref<32x8xf32, #tpu.memory_space<vmem>>, %arg3: memref<1x8xf32, #tpu.memory_space<vmem>>, %arg4: memref<8x32xf32, #tpu.memory_space<vmem>>, %arg5: memref<1x32xf32, #tpu.memory_space<vmem>>, %arg6: memref<4x32x256xf32, #tpu.memory_space<vmem>>, %arg7: memref<4x32xf32, #tpu.memory_space<vmem>>) attributes {dimension_semantics = [#tpu.dimension_semantics<parallel>], iteration_bounds = array<i64: 1>, scalar_prefetch = 0 : i64, scratch_operands = 1 : i64, tpu.core_type = #tpu.core_type<tc>, window_params = [{transform_indices = @transform_0, window_bounds = array<i64: 4, 32, 256>}, {pipeline_mode = #tpu.pipeline_mode<synchronous>, transform_indices = @transform_1, window_bounds = array<i64: 32, 8>}, {pipeline_mode = #tpu.pipeline_mode<synchronous>, transform_indices = @transform_2, window_bounds = array<i64: 1, 8>}, {pipeline_mode = #tpu.pipeline_mode<synchronous>, transform_indices = @transform_3, window_bounds = array<i64: 8, 32>}, {pipeline_mode = #tpu.pipeline_mode<synchronous>, transform_indices = @transform_4, window_bounds = array<i64: 1, 32>}, {transform_indices = @transform_5, window_bounds = array<i64: 4, 32, 256>}]} {
    %c0 = arith.constant 0 : index
    %c0_0 = arith.constant 0 : index
    %c0_1 = arith.constant 0 : index
    %0 = vector.load %arg1[%c0, %c0_0, %c0_1] : memref<4x32x256xf32, #tpu.memory_space<vmem>>, vector<4x32x256xf32>
    %cst = arith.constant dense<0.000000e+00> : vector<4x32xf32>
    %1 = vector.multi_reduction <add>, %0, %cst [2] : vector<4x32x256xf32> to vector<4x32xf32>
    %cst_2 = arith.constant 3.906250e-03 : f32
    %2 = vector.broadcast %cst_2 : f32 to vector<4x32xf32>
    %3 = arith.mulf %1, %2 : vector<4x32xf32>
    %c0_3 = arith.constant 0 : index
    %c0_4 = arith.constant 0 : index
    %4 = vector.load %arg2[%c0_3, %c0_4] : memref<32x8xf32, #tpu.memory_space<vmem>>, vector<32x8xf32>
    %cst_5 = arith.constant dense<0.000000e+00> : vector<4x8xf32>
    %5 = tpu.matmul %3, %4, %cst_5 {dimension_numbers = #tpu.dot_dimension_numbers<[1], [0], [0], [1], [0, 0, 1, 1], [], []>} : vector<4x32xf32>, vector<32x8xf32>, vector<4x8xf32> -> vector<4x8xf32>
    %c0_6 = arith.constant 0 : index
    %c0_7 = arith.constant 0 : index
    %6 = vector.load %arg3[%c0_6, %c0_7] : memref<1x8xf32, #tpu.memory_space<vmem>>, vector<1x8xf32>
    %7 = vector.broadcast %6 : vector<1x8xf32> to vector<4x8xf32>
    %8 = arith.addf %5, %7 : vector<4x8xf32>
    %cst_8 = arith.constant 0.000000e+00 : f32
    %9 = vector.broadcast %cst_8 : f32 to vector<4x8xf32>
    %10 = arith.maximumf %8, %9 : vector<4x8xf32>
    %c0_9 = arith.constant 0 : index
    %c0_10 = arith.constant 0 : index
    %11 = vector.load %arg4[%c0_9, %c0_10] : memref<8x32xf32, #tpu.memory_space<vmem>>, vector<8x32xf32>
    %cst_11 = arith.constant dense<0.000000e+00> : vector<4x32xf32>
    %12 = tpu.matmul %10, %11, %cst_11 {dimension_numbers = #tpu.dot_dimension_numbers<[1], [0], [0], [1], [0, 0, 1, 1], [], []>} : vector<4x8xf32>, vector<8x32xf32>, vector<4x32xf32> -> vector<4x32xf32>
    %c0_12 = arith.constant 0 : index
    %c0_13 = arith.constant 0 : index
    %13 = vector.load %arg5[%c0_12, %c0_13] : memref<1x32xf32, #tpu.memory_space<vmem>>, vector<1x32xf32>
    %14 = vector.broadcast %13 : vector<1x32xf32> to vector<4x32xf32>
    %15 = arith.addf %12, %14 : vector<4x32xf32>
    %16 = arith.negf %15 : vector<4x32xf32>
    %17 = math.exp %16 : vector<4x32xf32>
    %cst_14 = arith.constant 1.000000e+00 : f32
    %18 = vector.broadcast %cst_14 : f32 to vector<4x32xf32>
    %19 = arith.addf %18, %17 : vector<4x32xf32>
    %20 = arith.divf %18, %19 : vector<4x32xf32>
    %c0_15 = arith.constant 0 : index
    %c0_16 = arith.constant 0 : index
    %21 = vector.load %arg7[%c0_15, %c0_16] : memref<4x32xf32, #tpu.memory_space<vmem>>, vector<4x32xf32>
    tpu.vector_store %arg7[%c0_15, %c0_16], %20 {strides = array<i32>} : memref<4x32xf32, #tpu.memory_space<vmem>>, vector<4x32xf32>,
    %c0_i32 = arith.constant 0 : i32
    %c4_i32 = arith.constant 4 : i32
    %22 = arith.addi %c0_i32, %c4_i32 : i32
    %c1_i32 = arith.constant 1 : i32
    scf.for %arg8 = %c0_i32 to %22 step %c1_i32  : i32 {
      %c1_i32_18 = arith.constant 1 : i32
      %23 = arith.muli %arg8, %c1_i32_18 : i32
      %c0_i32_19 = arith.constant 0 : i32
      %24 = arith.addi %c0_i32_19, %23 : i32
      %25 = arith.index_cast %24 : i32 to index
      %c0_20 = arith.constant 0 : index
      %26 = vector.load %arg7[%25, %c0_20] : memref<4x32xf32, #tpu.memory_space<vmem>>, vector<1x32xf32>
      %27 = vector.shape_cast %26 : vector<1x32xf32> to vector<32xf32>
      %28 = vector.shape_cast %27 : vector<32xf32> to vector<32x1xf32>
      %29 = arith.index_cast %24 : i32 to index
      %c0_21 = arith.constant 0 : index
      %c0_22 = arith.constant 0 : index
      %30 = vector.load %arg1[%29, %c0_21, %c0_22] : memref<4x32x256xf32, #tpu.memory_space<vmem>>, vector<1x32x256xf32>
      %31 = vector.shape_cast %30 : vector<1x32x256xf32> to vector<32x256xf32>
      %32 = vector.broadcast %28 : vector<32x1xf32> to vector<32x256xf32>
      %33 = arith.mulf %31, %32 : vector<32x256xf32>
      %34 = arith.index_cast %24 : i32 to index
      %c0_23 = arith.constant 0 : index
      %c0_24 = arith.constant 0 : index
      %35 = vector.load %arg6[%34, %c0_23, %c0_24] : memref<4x32x256xf32, #tpu.memory_space<vmem>>, vector<1x32x256xf32>
      %36 = vector.shape_cast %35 : vector<1x32x256xf32> to vector<32x256xf32>
      %37 = vector.shape_cast %33 : vector<32x256xf32> to vector<1x32x256xf32>
      tpu.vector_store %arg6[%34, %c0_23, %c0_24], %37 {strides = array<i32>} : memref<4x32x256xf32, #tpu.memory_space<vmem>>, vector<1x32x256xf32>,
    }
    %c4_i32_17 = arith.constant 4 : i32
    return
  }
  func.func @transform_0(%arg0: i32) -> (i32, i32, i32) {
    %c0_i32 = arith.constant 0 : i32
    %c0_i32_0 = arith.constant 0 : i32
    %c0_i32_1 = arith.constant 0 : i32
    return %arg0, %c0_i32, %c0_i32_0 : i32, i32, i32
  }
  func.func @transform_1(%arg0: i32) -> (i32, i32) {
    %c0_i32 = arith.constant 0 : i32
    %c0_i32_0 = arith.constant 0 : i32
    %c0_i32_1 = arith.constant 0 : i32
    return %c0_i32, %c0_i32_0 : i32, i32
  }
  func.func @transform_2(%arg0: i32) -> (i32, i32) {
    %c0_i32 = arith.constant 0 : i32
    %c0_i32_0 = arith.constant 0 : i32
    %c0_i32_1 = arith.constant 0 : i32
    return %c0_i32, %c0_i32_0 : i32, i32
  }
  func.func @transform_3(%arg0: i32) -> (i32, i32) {
    %c0_i32 = arith.constant 0 : i32
    %c0_i32_0 = arith.constant 0 : i32
    %c0_i32_1 = arith.constant 0 : i32
    return %c0_i32, %c0_i32_0 : i32, i32
  }
  func.func @transform_4(%arg0: i32) -> (i32, i32) {
    %c0_i32 = arith.constant 0 : i32
    %c0_i32_0 = arith.constant 0 : i32
    %c0_i32_1 = arith.constant 0 : i32
    return %c0_i32, %c0_i32_0 : i32, i32
  }
  func.func @transform_5(%arg0: i32) -> (i32, i32, i32) {
    %c0_i32 = arith.constant 0 : i32
    %c0_i32_0 = arith.constant 0 : i32
    %c0_i32_1 = arith.constant 0 : i32
    return %arg0, %c0_i32, %c0_i32_0 : i32, i32, i32
  }
}

</mosaic_0001>

<llo_original>
// kernel: tpu_custom_call.1
$region0: #{tpu_custom_call.1}
  #allocation0 [shape = 'u32[]', space=smem, size = 0x4, offset = 0x4, fixed_abs, tag = 'smem constant byte address 0x4 - core index']
  #allocation1 [shape = 'u32[144,128]{1,0:T(1,128)}', space=vmem, size = 0x12000, scoped, tag = 'internal scratch']
  #allocation2 [shape = 'f32[4,32]{1,0:T(4,128)}', space=vmem, size = 0x800, scoped, tag = 'scratch operand']
  %s0 = inlined_call_operand.hbm [shape: f32[4,32,256], index: 0, kind: input, shape index: {}]
  %s1 = inlined_call_operand.vmem [shape: f32[32,8], index: 1, kind: input, shape index: {}]
  %s2 = inlined_call_operand.vmem [shape: f32[1,8], index: 2, kind: input, shape index: {}]
  %s3 = inlined_call_operand.vmem [shape: f32[8,32], index: 3, kind: input, shape index: {}]
  %s4 = inlined_call_operand.vmem [shape: f32[1,32], index: 4, kind: input, shape index: {}]
  %s5 = inlined_call_operand.hbm [shape: f32[4,32,256], index: 5, kind: output, shape index: {}]
  %s6 = sld [smem:[#allocation0]]
  $region41: #{tpu_custom_call.1} parent=0
    _
  %s8 = ssub.s32 1, %s6
  %s9 = scalar_select 0, %s8, %s6
  $region1: #{tpu_custom_call.1} parent=0
    #allocation3 [shape = 'u8[131072]{0}', space=vmem, size = 0x20000, scoped, tag = 'input window, operand 0, single buffered']
    #allocation4 [shape = 's32[1]{0}', space=sflag, size = 0x4, scoped, tag = 'scoped memory for tpu_custom_call.1']
    #allocation5 [shape = 's32[1]{0}', space=sflag, size = 0x4, scoped, tag = 'scoped memory for tpu_custom_call.1']
    #allocation6 [shape = 'u8[131072]{0}', space=vmem, size = 0x20000, scoped, tag = 'output window, operand 0, single buffered']
    %10 = vsyncpa [#allocation4], 0
    %11 = vsyncpa [#allocation5], 0
    // Predicated region
    $region2: #{tpu_custom_call.1} parent=1 // pred_check
      _
    $region3: #{tpu_custom_call.1} parent=1 // pred_check_branch
      %13 = sbr.rel (0) target = $region5
    $region4: #{tpu_custom_call.1} parent=1 // pred_region
      %s15 = ssub.s32 4096, 4096
      %16 = vsyncadd [#allocation4], %s15
      %s17 = sshll.u32 [#allocation3], 4
      %s18 = int_to_ptr.vmem [resolvable:$true] %s17
      %23 = dma.hbm_to_vmem [thread:$0]  %s0, 4096, %s18, [#allocation4], 256, 256, 16
    $region5: #{tpu_custom_call.1} parent=1 // pred_fallthru
      _
    // Predicated region
    $region6: #{tpu_custom_call.1} parent=1 // pred_check
      _
    $region7: #{tpu_custom_call.1} parent=1 // pred_check_branch
      %25 = sbr.rel (0) target = $region9
    $region8: #{tpu_custom_call.1} parent=1 // pred_region
      _
    $region9: #{tpu_custom_call.1} parent=1 // pred_fallthru
      _
    // Predicated region
    $region10: #{tpu_custom_call.1} parent=1 // pred_check
      _
    $region11: #{tpu_custom_call.1} parent=1 // pred_check_branch
      %27 = sbr.rel (0) target = $region13
    $region12: #{tpu_custom_call.1} parent=1 // pred_region
      _
    $region13: #{tpu_custom_call.1} parent=1 // pred_fallthru
      _
    // Predicated region
    $region14: #{tpu_custom_call.1} parent=1 // pred_check
      _
    $region15: #{tpu_custom_call.1} parent=1 // pred_check_branch
      %29 = sbr.rel (0) target = $region17
    $region16: #{tpu_custom_call.1} parent=1 // pred_region
      _
    $region17: #{tpu_custom_call.1} parent=1 // pred_fallthru
      _
    // Predicated region
    $region18: #{tpu_custom_call.1} parent=1 // pred_check
      _
    $region19: #{tpu_custom_call.1} parent=1 // pred_check_branch
      %31 = sbr.rel (0) target = $region21
    $region20: #{tpu_custom_call.1} parent=1 // pred_region
      _
    $region21: #{tpu_custom_call.1} parent=1 // pred_fallthru
      _
    // Predicated region
    $region22: #{tpu_custom_call.1} parent=1 // pred_check
      _
    $region23: #{tpu_custom_call.1} parent=1 // pred_check_branch
      %33 = sbr.rel (0) target = $region25
    $region24: #{tpu_custom_call.1} parent=1 // pred_region
      %34 = dma.done [#allocation4], 4096
    $region25: #{tpu_custom_call.1} parent=1 // pred_fallthru
      _
    %v35 = vld [vmem:[#allocation3] sm:$0xff]
    %v36 = vld [vmem:[#allocation3 + $0x8] sm:$0xff]
    %v37 = vld [vmem:[#allocation3 + $0x10] sm:$0xff]
    %v38 = vld [vmem:[#allocation3 + $0x18] sm:$0xff]
    %v39 = vld [vmem:[#allocation3 + $0x20] sm:$0xff]
    %v40 = vld [vmem:[#allocation3 + $0x28] sm:$0xff]
    %v41 = vld [vmem:[#allocation3 + $0x30] sm:$0xff]
    %v42 = vld [vmem:[#allocation3 + $0x38] sm:$0xff]
    %v43 = vld [vmem:[#allocation3 + $0x40] sm:$0xff]
    %v44 = vld [vmem:[#allocation3 + $0x48] sm:$0xff]
    %v45 = vld [vmem:[#allocation3 + $0x50] sm:$0xff]
    %v46 = vld [vmem:[#allocation3 + $0x58] sm:$0xff]
    %v47 = vld [vmem:[#allocation3 + $0x60] sm:$0xff]
    %v48 = vld [vmem:[#allocation3 + $0x68] sm:$0xff]
    %v49 = vld [vmem:[#allocation3 + $0x70] sm:$0xff]
    %v50 = vld [vmem:[#allocation3 + $0x78] sm:$0xff]
    %v51 = vld [vmem:[#allocation3 + $0x80] sm:$0xff]
    %v52 = vld [vmem:[#allocation3 + $0x88] sm:$0xff]
    %v53 = vld [vmem:[#allocation3 + $0x90] sm:$0xff]
    %v54 = vld [vmem:[#allocation3 + $0x98] sm:$0xff]
    %v55 = vld [vmem:[#allocation3 + $0xa0] sm:$0xff]
    %v56 = vld [vmem:[#allocation3 + $0xa8] sm:$0xff]
    %v57 = vld [vmem:[#allocation3 + $0xb0] sm:$0xff]
    %v58 = vld [vmem:[#allocation3 + $0xb8] sm:$0xff]
    %v59 = vld [vmem:[#allocation3 + $0xc0] sm:$0xff]
    %v60 = vld [vmem:[#allocation3 + $0xc8] sm:$0xff]
    %v61 = vld [vmem:[#allocation3 + $0xd0] sm:$0xff]
    %v62 = vld [vmem:[#allocation3 + $0xd8] sm:$0xff]
    %v63 = vld [vmem:[#allocation3 + $0xe0] sm:$0xff]
    %v64 = vld [vmem:[#allocation3 + $0xe8] sm:$0xff]
    %v65 = vld [vmem:[#allocation3 + $0xf0] sm:$0xff]
    %v66 = vld [vmem:[#allocation3 + $0xf8] sm:$0xff]
    %v67 = vadd.f32 %v35, %v36
    %68 = vadd.xlane.f32.xlu0 %v67
    %v69 = vpop.xlane.xlu0 %68
    %v70 = vadd.f32 %v37, %v38
    %71 = vadd.xlane.f32.xlu0 %v70
    %v72 = vpop.xlane.xlu0 %71
    %v73 = vadd.f32 %v39, %v40
    %74 = vadd.xlane.f32.xlu0 %v73
    %v75 = vpop.xlane.xlu0 %74
    %v76 = vadd.f32 %v41, %v42
    %77 = vadd.xlane.f32.xlu0 %v76
    %v78 = vpop.xlane.xlu0 %77
    %v79 = vadd.f32 %v43, %v44
    %80 = vadd.xlane.f32.xlu0 %v79
    %v81 = vpop.xlane.xlu0 %80
    %v82 = vadd.f32 %v45, %v46
    %83 = vadd.xlane.f32.xlu0 %v82
    %v84 = vpop.xlane.xlu0 %83
    %v85 = vadd.f32 %v47, %v48
    %86 = vadd.xlane.f32.xlu0 %v85
    %v87 = vpop.xlane.xlu0 %86
    %v88 = vadd.f32 %v49, %v50
    %89 = vadd.xlane.f32.xlu0 %v88
    %v90 = vpop.xlane.xlu0 %89
    %v91 = vadd.f32 %v51, %v52
    %92 = vadd.xlane.f32.xlu0 %v91
    %v93 = vpop.xlane.xlu0 %92
    %v94 = vadd.f32 %v53, %v54
    %95 = vadd.xlane.f32.xlu0 %v94
    %v96 = vpop.xlane.xlu0 %95
    %v97 = vadd.f32 %v55, %v56
    %98 = vadd.xlane.f32.xlu0 %v97
    %v99 = vpop.xlane.xlu0 %98
    %v100 = vadd.f32 %v57, %v58
    %101 = vadd.xlane.f32.xlu0 %v100
    %v102 = vpop.xlane.xlu0 %101
    %v103 = vadd.f32 %v59, %v60
    %104 = vadd.xlane.f32.xlu0 %v103
    %v105 = vpop.xlane.xlu0 %104
    %v106 = vadd.f32 %v61, %v62
    %107 = vadd.xlane.f32.xlu0 %v106
    %v108 = vpop.xlane.xlu0 %107
    %v109 = vadd.f32 %v63, %v64
    %110 = vadd.xlane.f32.xlu0 %v109
    %v111 = vpop.xlane.xlu0 %110
    %v112 = vadd.f32 %v65, %v66
    %113 = vadd.xlane.f32.xlu0 %v112
    %v114 = vpop.xlane.xlu0 %113
    %v115 = vmul.f32 %v69, 0.00390625
    %v116 = vmul.f32 %v72, 0.00390625
    %v117 = vmul.f32 %v75, 0.00390625
    %v118 = vmul.f32 %v78, 0.00390625
    %v119 = vmul.f32 %v81, 0.00390625
    %v120 = vmul.f32 %v84, 0.00390625
    %v121 = vmul.f32 %v87, 0.00390625
    %v122 = vmul.f32 %v90, 0.00390625
    %v123 = vmul.f32 %v93, 0.00390625
    %v124 = vmul.f32 %v96, 0.00390625
    %v125 = vmul.f32 %v99, 0.00390625
    %v126 = vmul.f32 %v102, 0.00390625
    %v127 = vmul.f32 %v105, 0.00390625
    %v128 = vmul.f32 %v108, 0.00390625
    %v129 = vmul.f32 %v111, 0.00390625
    %v130 = vmul.f32 %v114, 0.00390625
    %v131 = vld [vmem:[%s1] sm:$0xff]
    %v132 = vld [vmem:[%s1 + $0x8] sm:$0xff]
    %v133 = vld [vmem:[%s1 + $0x10] sm:$0xff]
    %v134 = vld [vmem:[%s1 + $0x18] sm:$0xff]
    %v135 = vld [vmem:[%s2] sm:$0x1]
    %v137 = vlaneseq
    %v138 = vshrl.u32 %v137, 7
    %v139 = vsub.s32 0, %v138
    %v140 = vrot.slane %v135, %v139
    %v158 = vlaneseq
    %v159 = vand.u32 %v158, 127
    %v160 = vlaneseq
    %v161 = vshrl.u32 %v160, 7
    %v162 = vsub.s32 %v159, %v161
    %v163 = vrot.slane %v115, %v162
    %v164 = vadd.s32 %v159, 4294967288
    %v165 = vlaneseq
    %v166 = vshrl.u32 %v165, 7
    %v167 = vsub.s32 %v164, %v166
    %v168 = vrot.slane %v116, %v167
    %vm169 = vcmask 130112
    %v170 = vsel %vm169, %v168, %v163
    %v171 = vadd.s32 %v159, 4294967280
    %v172 = vlaneseq
    %v173 = vshrl.u32 %v172, 7
    %v174 = vsub.s32 %v171, %v173
    %v175 = vrot.slane %v117, %v174
    %vm176 = vcmask 195712
    %v177 = vsel %vm176, %v175, %v170
    %v178 = vadd.s32 %v159, 4294967272
    %v179 = vlaneseq
    %v180 = vshrl.u32 %v179, 7
    %v181 = vsub.s32 %v178, %v180
    %v182 = vrot.slane %v118, %v181
    %vm183 = vcmask 261312
    %v184 = vsel %vm183, %v182, %v177
    %v185 = vlaneseq
    %v186 = vshrl.u32 %v185, 7
    %v187 = vsub.s32 %v159, %v186
    %v188 = vrot.slane %v119, %v187
    %v189 = vlaneseq
    %v190 = vshrl.u32 %v189, 7
    %v191 = vsub.s32 %v164, %v190
    %v192 = vrot.slane %v120, %v191
    %v193 = vsel %vm169, %v192, %v188
    %v194 = vlaneseq
    %v195 = vshrl.u32 %v194, 7
    %v196 = vsub.s32 %v171, %v195
    %v197 = vrot.slane %v121, %v196
    %v198 = vsel %vm176, %v197, %v193
    %v199 = vlaneseq
    %v200 = vshrl.u32 %v199, 7
    %v201 = vsub.s32 %v178, %v200
    %v202 = vrot.slane %v122, %v201
    %v203 = vsel %vm183, %v202, %v198
    %v204 = vlaneseq
    %v205 = vshrl.u32 %v204, 7
    %v206 = vsub.s32 %v159, %v205
    %v207 = vrot.slane %v123, %v206
    %v208 = vlaneseq
    %v209 = vshrl.u32 %v208, 7
    %v210 = vsub.s32 %v164, %v209
    %v211 = vrot.slane %v124, %v210
    %v212 = vsel %vm169, %v211, %v207
    %v213 = vlaneseq
    %v214 = vshrl.u32 %v213, 7
    %v215 = vsub.s32 %v171, %v214
    %v216 = vrot.slane %v125, %v215
    %v217 = vsel %vm176, %v216, %v212
    %v218 = vlaneseq
    %v219 = vshrl.u32 %v218, 7
    %v220 = vsub.s32 %v178, %v219
    %v221 = vrot.slane %v126, %v220
    %v222 = vsel %vm183, %v221, %v217
    %v223 = vlaneseq
    %v224 = vshrl.u32 %v223, 7
    %v225 = vsub.s32 %v159, %v224
    %v226 = vrot.slane %v127, %v225
    %v227 = vlaneseq
    %v228 = vshrl.u32 %v227, 7
    %v229 = vsub.s32 %v164, %v228
    %v230 = vrot.slane %v128, %v229
    %v231 = vsel %vm169, %v230, %v226
    %v232 = vlaneseq
    %v233 = vshrl.u32 %v232, 7
    %v234 = vsub.s32 %v171, %v233
    %v235 = vrot.slane %v129, %v234
    %v236 = vsel %vm176, %v235, %v231
    %v237 = vlaneseq
    %v238 = vshrl.u32 %v237, 7
    %v239 = vsub.s32 %v178, %v238
    %v240 = vrot.slane %v130, %v239
    %v241 = vsel %vm183, %v240, %v236
    %vm242 = vcmask 1041409
    %v243 = vsel %vm242, %v203, %v184
    %vm244 = vcmask 1042434
    %v245 = vsel %vm244, %v222, %v243
    %vm246 = vcmask 1043459
    %v247 = vsel %vm246, %v241, %v245
    %vm248 = vcmask 261120
    %v249 = vsel %vm248, %v247, 0
    %251 = vmatprep.subr.mxu0 0.0
    %252 = vmatpush1.msra.mxu0 %v131
    %253 = vmatprep.subr.mxu0 0.0
    %254 = vmatpush1.msra.mxu0 %v132
    %255 = vmatprep.subr.mxu0 0.0
    %256 = vmatpush1.msra.mxu0 %v133
    %257 = vmatprep.subr.mxu0 0.0
    %258 = vmatpush1.msra.mxu0 %v134
    %259 = vmatprep.subr.mxu0 0.0
    %260 = vmatpush1.msra.mxu0 0.0
    %261 = vmatprep.subr.mxu0 0.0
    %262 = vmatpush1.msra.mxu0 0.0
    %263 = vmatprep.subr.mxu0 0.0
    %264 = vmatpush1.msra.mxu0 0.0
    %265 = vmatprep.subr.mxu0 0.0
    %266 = vmatpush1.msra.mxu0 0.0
    %267 = vmatprep.subr.mxu0 0.0
    %268 = vmatpush1.msra.mxu0 0.0
    %269 = vmatprep.subr.mxu0 0.0
    %270 = vmatpush1.msra.mxu0 0.0
    %271 = vmatprep.subr.mxu0 0.0
    %272 = vmatpush1.msra.mxu0 0.0
    %273 = vmatprep.subr.mxu0 0.0
    %274 = vmatpush1.msra.mxu0 0.0
    %275 = vmatprep.subr.mxu0 0.0
    %276 = vmatpush1.msra.mxu0 0.0
    %277 = vmatprep.subr.mxu0 0.0
    %278 = vmatpush1.msra.mxu0 0.0
    %279 = vmatprep.subr.mxu0 0.0
    %280 = vmatpush1.msra.mxu0 0.0
    %281 = vmatprep.subr.mxu0 0.0
    %282 = vmatpush1.msra.mxu0 0.0
    %283 = vmatprep.subr.mxu0 0.0
    %284 = vmatpush1.msra.mxu0 0.0
    %285 = vmatprep.subr.mxu0 0.0
    %286 = vmatpush1.msra.mxu0 0.0
    %287 = vmatprep.subr.mxu0 0.0
    %288 = vmatpush1.msra.mxu0 0.0
    %289 = vmatprep.subr.mxu0 0.0
    %290 = vmatpush1.msra.mxu0 0.0
    %291 = vmatprep.subr.mxu0 0.0
    %292 = vmatpush1.msra.mxu0 0.0
    %293 = vmatprep.subr.mxu0 0.0
    %294 = vmatpush1.msra.mxu0 0.0
    %295 = vmatprep.subr.mxu0 0.0
    %296 = vmatpush1.msra.mxu0 0.0
    %297 = vmatprep.subr.mxu0 0.0
    %298 = vmatpush1.msra.mxu0 0.0
    %299 = vmatprep.subr.mxu0 0.0
    %300 = vmatpush1.msra.mxu0 0.0
    %301 = vmatprep.subr.mxu0 0.0
    %302 = vmatpush1.msra.mxu0 0.0
    %303 = vmatprep.subr.mxu0 0.0
    %304 = vmatpush1.msra.mxu0 0.0
    %305 = vmatprep.subr.mxu0 0.0
    %306 = vmatpush1.msra.mxu0 0.0
    %307 = vmatprep.subr.mxu0 0.0
    %308 = vmatpush1.msra.mxu0 0.0
    %309 = vmatprep.subr.mxu0 0.0
    %310 = vmatpush1.msra.mxu0 0.0
    %311 = vmatprep.subr.mxu0 0.0
    %312 = vmatpush1.msra.mxu0 0.0
    %313 = vmatprep.subr.mxu0 0.0
    %314 = vmatpush1.msra.mxu0 0.0
    %315 = vmatprep.mubr.f32.mxu0 0.0
    %316 = vmatmul.mubr.f32.gmra.mrb[0].mxu0 %v249
    %v317 = vpop.f32.mrb[0].mxu0
    %v318 = vadd.f32 %v140, %v317
    %v319 = vpop.f32.mrb[0].mxu0
    %320 = vdwg.mxu0
    %v321 = vmax.f32 %v318, 0.0
    %v322 = vld [vmem:[%s3] sm:$0xff]
    %v323 = vld [vmem:[%s4] sm:$0x1]
    %v325 = vlaneseq
    %v326 = vshrl.u32 %v325, 7
    %v327 = vsub.s32 0, %v326
    %v328 = vrot.slane %v323, %v327
    %vm330 = vcmask 64512
    %v332 = vsel %vm330, %v321, 0
    %334 = vmatprep.subr.mxu0 0.0
    %335 = vmatpush1.msra.mxu0 %v322
    %336 = vmatprep.subr.mxu0 0.0
    %337 = vmatpush1.msra.mxu0 0.0
    %338 = vmatprep.subr.mxu0 0.0
    %339 = vmatpush1.msra.mxu0 0.0
    %340 = vmatprep.subr.mxu0 0.0
    %341 = vmatpush1.msra.mxu0 0.0
    %342 = vmatprep.subr.mxu0 0.0
    %343 = vmatpush1.msra.mxu0 0.0
    %344 = vmatprep.subr.mxu0 0.0
    %345 = vmatpush1.msra.mxu0 0.0
    %346 = vmatprep.subr.mxu0 0.0
    %347 = vmatpush1.msra.mxu0 0.0
    %348 = vmatprep.subr.mxu0 0.0
    %349 = vmatpush1.msra.mxu0 0.0
    %350 = vmatprep.subr.mxu0 0.0
    %351 = vmatpush1.msra.mxu0 0.0
    %352 = vmatprep.subr.mxu0 0.0
    %353 = vmatpush1.msra.mxu0 0.0
    %354 = vmatprep.subr.mxu0 0.0
    %355 = vmatpush1.msra.mxu0 0.0
    %356 = vmatprep.subr.mxu0 0.0
    %357 = vmatpush1.msra.mxu0 0.0
    %358 = vmatprep.subr.mxu0 0.0
    %359 = vmatpush1.msra.mxu0 0.0
    %360 = vmatprep.subr.mxu0 0.0
    %361 = vmatpush1.msra.mxu0 0.0
    %362 = vmatprep.subr.mxu0 0.0
    %363 = vmatpush1.msra.mxu0 0.0
    %364 = vmatprep.subr.mxu0 0.0
    %365 = vmatpush1.msra.mxu0 0.0
    %366 = vmatprep.subr.mxu0 0.0
    %367 = vmatpush1.msra.mxu0 0.0
    %368 = vmatprep.subr.mxu0 0.0
    %369 = vmatpush1.msra.mxu0 0.0
    %370 = vmatprep.subr.mxu0 0.0
    %371 = vmatpush1.msra.mxu0 0.0
    %372 = vmatprep.subr.mxu0 0.0
    %373 = vmatpush1.msra.mxu0 0.0
    %374 = vmatprep.subr.mxu0 0.0
    %375 = vmatpush1.msra.mxu0 0.0
    %376 = vmatprep.subr.mxu0 0.0
    %377 = vmatpush1.msra.mxu0 0.0
    %378 = vmatprep.subr.mxu0 0.0
    %379 = vmatpush1.msra.mxu0 0.0
    %380 = vmatprep.subr.mxu0 0.0
    %381 = vmatpush1.msra.mxu0 0.0
    %382 = vmatprep.subr.mxu0 0.0
    %383 = vmatpush1.msra.mxu0 0.0
    %384 = vmatprep.subr.mxu0 0.0
    %385 = vmatpush1.msra.mxu0 0.0
    %386 = vmatprep.subr.mxu0 0.0
    %387 = vmatpush1.msra.mxu0 0.0
    %388 = vmatprep.subr.mxu0 0.0
    %389 = vmatpush1.msra.mxu0 0.0
    %390 = vmatprep.subr.mxu0 0.0
    %391 = vmatpush1.msra.mxu0 0.0
    %392 = vmatprep.subr.mxu0 0.0
    %393 = vmatpush1.msra.mxu0 0.0
    %394 = vmatprep.subr.mxu0 0.0
    %395 = vmatpush1.msra.mxu0 0.0
    %396 = vmatprep.subr.mxu0 0.0
    %397 = vmatpush1.msra.mxu0 0.0
    %398 = vmatprep.mubr.f32.mxu0 0.0
    %399 = vmatmul.mubr.f32.gmra.mrb[0].mxu0 %v332
    %v400 = vpop.f32.mrb[0].mxu0
    %v401 = vadd.f32 %v328, %v400
    %v402 = vpop.f32.mrb[0].mxu0
    %403 = vdwg.mxu0
    %v404 = vxor.u32 %v401, 2147483648
    %v405 = vmul.f32 %v404, 1.442695
    %v406 = vpow.pop %v405
    %v407 = vadd.f32 %v406, 1.0
    %v408 = vrcp.pop %v407
    %v409 = vmul.f32 1.0, %v408
    %vm410 = vcmask 257024
    %411 = vst.msk [vmem:[#allocation2] sm:$0xf] %vm410, %v409
    loop: start=0, step=1, limit=4
    $region26: #{tpu_custom_call.1} parent=1 // loop_pre_header
      _
    $region27: #{tpu_custom_call.1} parent=1 // loop_header
      %s413 = sphi 0, %s417
      %p414 = scmp.ge.s32.totalorder %s413, 4
    $region28: #{tpu_custom_call.1} parent=1 // loop_header_branch
      %416 = sbr.rel (%p414) target = $region32
    $region29: #{tpu_custom_call.1} parent=1 // loop_body
      %s418 = scalar_lea.vmem [#allocation2], %s413
      %v419 = vld [vmem:[%s418] sm:$0x1]
      %v420 = vlaneseq
      %v421 = vshrl.u32 %v420, 7
      %v422 = vsub.s32 0, %v421
      %v423 = vrot.slane %v419, %v422
      %425 = vbcast.lane.b32.xlu0 %v423, 256
      %v426 = vpop.permute.xlu0 %425
      %s428 = sor.u32 256, 8
      %429 = vbcast.lane.b32.xlu0 %v423, %s428
      %v430 = vpop.permute.xlu0 %429
      %s432 = sor.u32 256, 16
      %433 = vbcast.lane.b32.xlu0 %v423, %s432
      %v434 = vpop.permute.xlu0 %433
      %s436 = sor.u32 256, 24
      %437 = vbcast.lane.b32.xlu0 %v423, %s436
      %v438 = vpop.permute.xlu0 %437
      %s439 = smul.u32 %s413, 8
      %s440 = smul.addr %s439, 8
      %s441 = scalar_lea.vmem [#allocation3], %s440
      %v442 = vld [vmem:[%s441] sm:$0xff]
      %v443 = vld [vmem:[%s441 + $0x8] sm:$0xff]
      %v444 = vld [vmem:[%s441 + $0x10] sm:$0xff]
      %v445 = vld [vmem:[%s441 + $0x18] sm:$0xff]
      %v446 = vld [vmem:[%s441 + $0x20] sm:$0xff]
      %v447 = vld [vmem:[%s441 + $0x28] sm:$0xff]
      %v448 = vld [vmem:[%s441 + $0x30] sm:$0xff]
      %v449 = vld [vmem:[%s441 + $0x38] sm:$0xff]
      %v450 = vmul.f32 %v442, %v426
      %v451 = vmul.f32 %v443, %v426
      %v452 = vmul.f32 %v444, %v430
      %v453 = vmul.f32 %v445, %v430
      %v454 = vmul.f32 %v446, %v434
      %v455 = vmul.f32 %v447, %v434
      %v456 = vmul.f32 %v448, %v438
      %v457 = vmul.f32 %v449, %v438
      %s458 = smul.addr %s439, 8
      %s459 = scalar_lea.vmem [#allocation6], %s458
      %460 = vst [vmem:[%s459] sm:$0xff] %v450
      %461 = vst [vmem:[%s459 + $0x8] sm:$0xff] %v451
      %462 = vst [vmem:[%s459 + $0x10] sm:$0xff] %v452
      %463 = vst [vmem:[%s459 + $0x18] sm:$0xff] %v453
      %464 = vst [vmem:[%s459 + $0x20] sm:$0xff] %v454
      %465 = vst [vmem:[%s459 + $0x28] sm:$0xff] %v455
      %466 = vst [vmem:[%s459 + $0x30] sm:$0xff] %v456
      %467 = vst [vmem:[%s459 + $0x38] sm:$0xff] %v457
    $region30: #{tpu_custom_call.1} parent=1 // loop_footer
      %s417 = sadd.s32 1, %s413
    $region31: #{tpu_custom_call.1} parent=1 // loop_footer_branch
      %412 = sbr.rel target = $region27
    $region32: #{tpu_custom_call.1} parent=1 // loop_exit
      _
    // Predicated region
    $region33: #{tpu_custom_call.1} parent=1 // pred_check
      _
    $region34: #{tpu_custom_call.1} parent=1 // pred_check_branch
      %469 = sbr.rel (0) target = $region36
    $region35: #{tpu_custom_call.1} parent=1 // pred_region
      %s471 = ssub.s32 4096, 4096
      %472 = vsyncadd [#allocation5], %s471
      %s473 = sshll.u32 [#allocation6], 4
      %s474 = int_to_ptr.vmem [resolvable:$true] %s473
      %479 = dma.vmem_to_hbm [thread:$0]  %s474, 4096, %s5, [#allocation5], 256, 256, 16
    $region36: #{tpu_custom_call.1} parent=1 // pred_fallthru
      _
    // Predicated region
    $region37: #{tpu_custom_call.1} parent=1 // pred_check
      _
    $region38: #{tpu_custom_call.1} parent=1 // pred_check_branch
      %481 = sbr.rel (0) target = $region40
    $region39: #{tpu_custom_call.1} parent=1 // pred_region
      %482 = dma.done [#allocation5], 4096
    $region40: #{tpu_custom_call.1} parent=1 // pred_fallthru
      _
    %483 = vsyncpa [#allocation4], 1
    %484 = vsyncpa [#allocation5], 1

</llo_original>
